<compile_context>
chip_gen: v6e
topology: v6e:2x2x1
jax: 0.10.0
libtpu: 0.0.40
codegen_flags: <defaults>
</compile_context>

<pallas_src>
import functools

import jax
import jax.numpy as jnp
from jax.experimental import pallas as pl
from jax.experimental.pallas import tpu as pltpu


def _sisnr_rows_kernel(x_ref, y_ref, snr_ref, *, eps):
    """Compute per-row SI-SNR (in dB) for one tile of rows."""
    x = x_ref[...].astype(jnp.float32)   # (tb, T)
    y = y_ref[...].astype(jnp.float32)   # (tb, T)

    # Three row reductions only (vs. 4 + two full-tile temporaries before).
    xx = jnp.sum(x * x, axis=-1, keepdims=True)   # (tb, 1)
    xy = jnp.sum(x * y, axis=-1, keepdims=True)   # (tb, 1)
    yy = jnp.sum(y * y, axis=-1, keepdims=True)   # (tb, 1)

    # s_target = alpha * y with alpha = <x,y> / (<y,y> + eps)
    alpha = xy / (yy + eps)
    target_norm = alpha * alpha * yy                       # ||s_target||^2
    noise_norm = xx - 2.0 * alpha * xy + alpha * alpha * yy  # ||x - s_target||^2
    noise_norm = jnp.maximum(noise_norm, 0.0)  # guard catastrophic cancellation

    snr_ref[...] = 10.0 * jnp.log10(target_norm / (noise_norm + eps) + eps)


def _choose_tile_rows(B, T, itemsize, target_block_bytes):
    """Largest row-tile (multiple of the sublane packing) fitting the budget."""
    if B * T * itemsize <= target_block_bytes:
        return B  # whole problem in one block (works for any B, T)
    align = 8 if itemsize >= 4 else (16 if itemsize == 2 else 32)
    rows = (target_block_bytes // (T * itemsize)) // align * align
    rows = max(align, min(rows, B))
    while rows > align and B % rows != 0:
        rows -= align
    if B % rows != 0:
        # TODO(synk): pad + mask ragged batches instead of falling back to a
        # single (possibly oversized) block.
        return B
    return rows


def sisnr_loss(x, y, *, eps=1e-8, target_block_bytes=4 << 20):
    """Negative SI-SNR loss, equivalent to SISNRLoss().forward(x, y)."""
    assert x.shape == y.shape and x.ndim == 2
    B, T = x.shape
    itemsize = jnp.dtype(x.dtype).itemsize
    tile_rows = _choose_tile_rows(B, T, itemsize, target_block_bytes)
    grid = (B // tile_rows,)

    kernel = functools.partial(_sisnr_rows_kernel, eps=eps)

    # TODO(synk): for extremely long T (block > VMEM budget even at 8 rows),
    # add a second "arbitrary" grid axis over T with xx/xy/yy accumulators.
    snr = pl.pallas_call(
        kernel,
        out_shape=jax.ShapeDtypeStruct((B, 1), jnp.float32),
        grid=grid,
        in_specs=[
            pl.BlockSpec((tile_rows, T), lambda i: (i, 0)),
            pl.BlockSpec((tile_rows, T), lambda i: (i, 0)),
        ],
        out_specs=pl.BlockSpec((tile_rows, 1), lambda i: (i, 0)),
        compiler_params=pltpu.CompilerParams(
            # Independent per-tile outputs -> grid axis can be megacore-sharded.
            dimension_semantics=("parallel",),
            # 2 inputs x 2 buffers x ~4 MiB blocks ~= 16 MiB; 48 MiB is safe on
            # v5e/v6e (128 MiB physical) and v7x (64 MiB per TC).
            vmem_limit_bytes=48 << 20,
        ),
    )(x, y)

    # loss = -mean over rows of per-row SNR (tiny reduction; done in XLA).
    return -jnp.mean(snr)


def _sisnr_ref(x, y, eps=1e-8):
    x = x.astype(jnp.float32)
    y = y.astype(jnp.float32)
    s1_s2 = jnp.sum(x * y, -1, keepdims=True)
    s2_s2 = jnp.sum(y * y, -1, keepdims=True)
    s_target = s1_s2 / (s2_s2 + eps) * y
    e_noise = x - s_target
    t_norm = jnp.sum(s_target * s_target, -1, keepdims=True)
    n_norm = jnp.sum(e_noise * e_noise, -1, keepdims=True)
    snr = 10.0 * jnp.log10(t_norm / (n_norm + eps) + eps)
    return -jnp.mean(snr)


if __name__ == "__main__":
    key = jax.random.PRNGKey(0)
    kx, ky = jax.random.split(key)
    B, T = 16, 256
    x = jax.random.normal(kx, (B, T), dtype=jnp.float32)
    y = jax.random.normal(ky, (B, T), dtype=jnp.float32)

    loss = sisnr_loss(x, y)
    jax.block_until_ready(loss)

    ref = _sisnr_ref(x, y)
    assert jnp.allclose(loss, ref, atol=1e-4, rtol=1e-4), (loss, ref)
    print("KERNEL_OK")
</pallas_src>

<mosaic_0001>
module attributes {stable_mosaic.version = 11 : i64} {
  func.func @_sisnr_rows_kernel(%arg0: i32, %arg1: memref<16x256xf32, #tpu.memory_space<vmem>>, %arg2: memref<16x256xf32, #tpu.memory_space<vmem>>, %arg3: memref<16x1xf32, #tpu.memory_space<vmem>>) attributes {dimension_semantics = [#tpu.dimension_semantics<parallel>], iteration_bounds = array<i64: 1>, scalar_prefetch = 0 : i64, scratch_operands = 0 : i64, tpu.core_type = #tpu.core_type<tc>, window_params = [{transform_indices = @transform_0, window_bounds = array<i64: 16, 256>}, {transform_indices = @transform_1, window_bounds = array<i64: 16, 256>}, {transform_indices = @transform_2, window_bounds = array<i64: 16, 1>}]} {
    %c0 = arith.constant 0 : index
    %c0_0 = arith.constant 0 : index
    %0 = vector.load %arg1[%c0, %c0_0] : memref<16x256xf32, #tpu.memory_space<vmem>>, vector<16x256xf32>
    %c0_1 = arith.constant 0 : index
    %c0_2 = arith.constant 0 : index
    %1 = vector.load %arg2[%c0_1, %c0_2] : memref<16x256xf32, #tpu.memory_space<vmem>>, vector<16x256xf32>
    %2 = arith.mulf %0, %0 : vector<16x256xf32>
    %cst = arith.constant dense<0.000000e+00> : vector<16xf32>
    %3 = vector.multi_reduction <add>, %2, %cst [1] : vector<16x256xf32> to vector<16xf32>
    %4 = vector.shape_cast %3 : vector<16xf32> to vector<16x1xf32>
    %5 = arith.mulf %0, %1 : vector<16x256xf32>
    %cst_3 = arith.constant dense<0.000000e+00> : vector<16xf32>
    %6 = vector.multi_reduction <add>, %5, %cst_3 [1] : vector<16x256xf32> to vector<16xf32>
    %7 = vector.shape_cast %6 : vector<16xf32> to vector<16x1xf32>
    %8 = arith.mulf %1, %1 : vector<16x256xf32>
    %cst_4 = arith.constant dense<0.000000e+00> : vector<16xf32>
    %9 = vector.multi_reduction <add>, %8, %cst_4 [1] : vector<16x256xf32> to vector<16xf32>
    %10 = vector.shape_cast %9 : vector<16xf32> to vector<16x1xf32>
    %cst_5 = arith.constant 9.99999993E-9 : f32
    %11 = vector.broadcast %cst_5 : f32 to vector<16x1xf32>
    %12 = arith.addf %10, %11 : vector<16x1xf32>
    %13 = arith.divf %7, %12 : vector<16x1xf32>
    %14 = arith.mulf %13, %13 : vector<16x1xf32>
    %15 = arith.mulf %14, %10 : vector<16x1xf32>
    %cst_6 = arith.constant 2.000000e+00 : f32
    %16 = vector.broadcast %cst_6 : f32 to vector<16x1xf32>
    %17 = arith.mulf %16, %13 : vector<16x1xf32>
    %18 = arith.mulf %17, %7 : vector<16x1xf32>
    %19 = arith.subf %4, %18 : vector<16x1xf32>
    %20 = arith.mulf %13, %13 : vector<16x1xf32>
    %21 = arith.mulf %20, %10 : vector<16x1xf32>
    %22 = arith.addf %19, %21 : vector<16x1xf32>
    %cst_7 = arith.constant 0.000000e+00 : f32
    %23 = vector.broadcast %cst_7 : f32 to vector<16x1xf32>
    %24 = arith.maximumf %22, %23 : vector<16x1xf32>
    %cst_8 = arith.constant 9.99999993E-9 : f32
    %25 = vector.broadcast %cst_8 : f32 to vector<16x1xf32>
    %26 = arith.addf %24, %25 : vector<16x1xf32>
    %27 = arith.divf %15, %26 : vector<16x1xf32>
    %cst_9 = arith.constant 9.99999993E-9 : f32
    %28 = vector.broadcast %cst_9 : f32 to vector<16x1xf32>
    %29 = arith.addf %27, %28 : vector<16x1xf32>
    %30 = math.log %29 : vector<16x1xf32>
    %cst_10 = arith.constant 0.434294492 : f32
    %31 = vector.broadcast %cst_10 : f32 to vector<16x1xf32>
    %32 = arith.mulf %30, %31 : vector<16x1xf32>
    %cst_11 = arith.constant 1.000000e+01 : f32
    %33 = vector.broadcast %cst_11 : f32 to vector<16x1xf32>
    %34 = arith.mulf %33, %32 : vector<16x1xf32>
    %c0_12 = arith.constant 0 : index
    %c0_13 = arith.constant 0 : index
    %35 = vector.load %arg3[%c0_12, %c0_13] : memref<16x1xf32, #tpu.memory_space<vmem>>, vector<16x1xf32>
    tpu.vector_store %arg3[%c0_12, %c0_13], %34 {strides = array<i32>} : memref<16x1xf32, #tpu.memory_space<vmem>>, vector<16x1xf32>,
    return
  }
  func.func @transform_0(%arg0: i32) -> (i32, i32) {
    %c0_i32 = arith.constant 0 : i32
    %c0_i32_0 = arith.constant 0 : i32
    return %arg0, %c0_i32 : i32, i32
  }
  func.func @transform_1(%arg0: i32) -> (i32, i32) {
    %c0_i32 = arith.constant 0 : i32
    %c0_i32_0 = arith.constant 0 : i32
    return %arg0, %c0_i32 : i32, i32
  }
  func.func @transform_2(%arg0: i32) -> (i32, i32) {
    %c0_i32 = arith.constant 0 : i32
    %c0_i32_0 = arith.constant 0 : i32
    return %arg0, %c0_i32 : i32, i32
  }
}

</mosaic_0001>

<llo_original>
// kernel: tpu_custom_call.1
$region0: #{tpu_custom_call.1}
  #allocation0 [shape = 'u32[]', space=smem, size = 0x4, offset = 0x4, fixed_abs, tag = 'smem constant byte address 0x4 - core index']
  #allocation1 [shape = 'u32[144,128]{1,0:T(1,128)}', space=vmem, size = 0x12000, scoped, tag = 'internal scratch']
  %s0 = inlined_call_operand.hbm [shape: f32[16,256], index: 0, kind: input, shape index: {}]
  %s1 = inlined_call_operand.hbm [shape: f32[16,256], index: 1, kind: input, shape index: {}]
  %s2 = inlined_call_operand.vmem [shape: f32[16,1], index: 2, kind: output, shape index: {}]
  %s3 = sld [smem:[#allocation0]]
  $region26: #{tpu_custom_call.1} parent=0
    _
  %s5 = ssub.s32 1, %s3
  %s6 = scalar_select 0, %s5, %s3
  $region1: #{tpu_custom_call.1} parent=0
    #allocation2 [shape = 'u8[16384]{0}', space=vmem, size = 0x4000, scoped, tag = 'input window, operand 0, single buffered']
    #allocation3 [shape = 's32[1]{0}', space=sflag, size = 0x4, scoped, tag = 'scoped memory for tpu_custom_call.1']
    #allocation4 [shape = 'u8[16384]{0}', space=vmem, size = 0x4000, scoped, tag = 'input window, operand 1, single buffered']
    #allocation5 [shape = 's32[1]{0}', space=sflag, size = 0x4, scoped, tag = 'scoped memory for tpu_custom_call.1']
    %7 = vsyncpa [#allocation3], 0
    %8 = vsyncpa [#allocation5], 0
    // Predicated region
    $region2: #{tpu_custom_call.1} parent=1 // pred_check
      _
    $region3: #{tpu_custom_call.1} parent=1 // pred_check_branch
      %10 = sbr.rel (0) target = $region5
    $region4: #{tpu_custom_call.1} parent=1 // pred_region
      %s12 = ssub.s32 512, 512
      %13 = vsyncadd [#allocation3], %s12
      %s14 = sshll.u32 [#allocation2], 4
      %s15 = int_to_ptr.vmem [resolvable:$true] %s14
      %20 = dma.hbm_to_vmem [thread:$0]  %s0, 512, %s15, [#allocation3], 256, 256, 16
    $region5: #{tpu_custom_call.1} parent=1 // pred_fallthru
      _
    // Predicated region
    $region6: #{tpu_custom_call.1} parent=1 // pred_check
      _
    $region7: #{tpu_custom_call.1} parent=1 // pred_check_branch
      %22 = sbr.rel (0) target = $region9
    $region8: #{tpu_custom_call.1} parent=1 // pred_region
      %s24 = ssub.s32 512, 512
      %25 = vsyncadd [#allocation5], %s24
      %s26 = sshll.u32 [#allocation4], 4
      %s27 = int_to_ptr.vmem [resolvable:$true] %s26
      %32 = dma.hbm_to_vmem [thread:$0]  %s1, 512, %s27, [#allocation5], 256, 256, 16
    $region9: #{tpu_custom_call.1} parent=1 // pred_fallthru
      _
    // Predicated region
    $region10: #{tpu_custom_call.1} parent=1 // pred_check
      _
    $region11: #{tpu_custom_call.1} parent=1 // pred_check_branch
      %34 = sbr.rel (0) target = $region13
    $region12: #{tpu_custom_call.1} parent=1 // pred_region
      %35 = dma.done [#allocation3], 512
    $region13: #{tpu_custom_call.1} parent=1 // pred_fallthru
      _
    // Predicated region
    $region14: #{tpu_custom_call.1} parent=1 // pred_check
      _
    $region15: #{tpu_custom_call.1} parent=1 // pred_check_branch
      %37 = sbr.rel (0) target = $region17
    $region16: #{tpu_custom_call.1} parent=1 // pred_region
      %38 = dma.done [#allocation5], 512
    $region17: #{tpu_custom_call.1} parent=1 // pred_fallthru
      _
    %v39 = vld [vmem:[#allocation2] sm:$0xff]
    %v40 = vld [vmem:[#allocation2 + $0x8] sm:$0xff]
    %v41 = vld [vmem:[#allocation2 + $0x10] sm:$0xff]
    %v42 = vld [vmem:[#allocation2 + $0x18] sm:$0xff]
    %v43 = vld [vmem:[#allocation4] sm:$0xff]
    %v44 = vld [vmem:[#allocation4 + $0x8] sm:$0xff]
    %v45 = vld [vmem:[#allocation4 + $0x10] sm:$0xff]
    %v46 = vld [vmem:[#allocation4 + $0x18] sm:$0xff]
    %v47 = vmul.f32 %v39, %v39
    %v48 = vmul.f32 %v40, %v40
    %v49 = vmul.f32 %v41, %v41
    %v50 = vmul.f32 %v42, %v42
    %v51 = vadd.f32 %v47, %v48
    %52 = vadd.xlane.f32.xlu0 %v51
    %v53 = vpop.xlane.xlu0 %52
    %v54 = vadd.f32 %v49, %v50
    %55 = vadd.xlane.f32.xlu0 %v54
    %v56 = vpop.xlane.xlu0 %55
    %v57 = vmul.f32 %v39, %v43
    %v58 = vmul.f32 %v40, %v44
    %v59 = vmul.f32 %v41, %v45
    %v60 = vmul.f32 %v42, %v46
    %v61 = vadd.f32 %v57, %v58
    %62 = vadd.xlane.f32.xlu0 %v61
    %v63 = vpop.xlane.xlu0 %62
    %v64 = vadd.f32 %v59, %v60
    %65 = vadd.xlane.f32.xlu0 %v64
    %v66 = vpop.xlane.xlu0 %65
    %v67 = vmul.f32 %v43, %v43
    %v68 = vmul.f32 %v44, %v44
    %v69 = vmul.f32 %v45, %v45
    %v70 = vmul.f32 %v46, %v46
    %v71 = vadd.f32 %v67, %v68
    %72 = vadd.xlane.f32.xlu0 %v71
    %v73 = vpop.xlane.xlu0 %72
    %v74 = vadd.f32 %v69, %v70
    %75 = vadd.xlane.f32.xlu0 %v74
    %v76 = vpop.xlane.xlu0 %75
    %v77 = vadd.f32 %v73, 1e-08
    %v78 = vadd.f32 %v76, 1e-08
    %v79 = vrcp.pop %v77
    %v80 = vmul.f32 %v63, %v79
    %v81 = vrcp.pop %v78
    %v82 = vmul.f32 %v66, %v81
    %v83 = vmul.f32 %v80, %v80
    %v84 = vmul.f32 %v82, %v82
    %v85 = vmul.f32 %v83, %v73
    %v86 = vmul.f32 %v84, %v76
    %v87 = vmul.f32 %v80, 2.0
    %v88 = vmul.f32 %v82, 2.0
    %v89 = vmul.f32 %v87, %v63
    %v90 = vmul.f32 %v88, %v66
    %v91 = vsub.f32 %v53, %v89
    %v92 = vsub.f32 %v56, %v90
    %v93 = vadd.f32 %v91, %v85
    %v94 = vadd.f32 %v92, %v86
    %v95 = vmax.f32 %v93, 0.0
    %v96 = vmax.f32 %v94, 0.0
    %v97 = vadd.f32 %v95, 1e-08
    %v98 = vadd.f32 %v96, 1e-08
    %v99 = vrcp.pop %v97
    %v100 = vmul.f32 %v85, %v99
    %v101 = vrcp.pop %v98
    %v102 = vmul.f32 %v86, %v101
    %v103 = vadd.f32 %v100, 1e-08
    %v104 = vadd.f32 %v102, 1e-08
    %v105 = vlog2.pop %v103
    %v106 = vmul.f32 %v105, 0.6931472
    %v107 = vlog2.pop %v104
    %v108 = vmul.f32 %v107, 0.6931472
    %v109 = vmul.f32 %v106, 0.4342945
    %v110 = vmul.f32 %v108, 0.4342945
    %v111 = vmul.f32 %v109, 10.0
    %v112 = vmul.f32 %v110, 10.0
    %vm113 = vcmask 7168
    %114 = vst.msk [vmem:[%s2] sm:$0xff] %vm113, %v111
    %115 = vst.msk [vmem:[%s2 + $0x8] sm:$0xff] %vm113, %v112
    // Predicated region
    $region18: #{tpu_custom_call.1} parent=1 // pred_check
      _
    $region19: #{tpu_custom_call.1} parent=1 // pred_check_branch
      %117 = sbr.rel (0) target = $region21
    $region20: #{tpu_custom_call.1} parent=1 // pred_region
      _
    $region21: #{tpu_custom_call.1} parent=1 // pred_fallthru
      _
    // Predicated region
    $region22: #{tpu_custom_call.1} parent=1 // pred_check
      _
    $region23: #{tpu_custom_call.1} parent=1 // pred_check_branch
      %119 = sbr.rel (0) target = $region25
    $region24: #{tpu_custom_call.1} parent=1 // pred_region
      _
    $region25: #{tpu_custom_call.1} parent=1 // pred_fallthru
      _
    %120 = vsyncpa [#allocation3], 1
    %121 = vsyncpa [#allocation5], 1

</llo_original>
